<compile_context>
chip_gen: v7x
topology: tpu7x:2x2x1
jax: 0.10.0
libtpu: 0.0.40
codegen_flags: <defaults>
</compile_context>

<pallas_src>
import functools

import jax
import jax.numpy as jnp
from jax.experimental import pallas as pl
from jax.experimental.pallas import tpu as pltpu


def _uplinear_kernel(x_ref, w1_ref, b1_ref, w2bd_ref, b2_ref, out_ref, *, activation):
    # x_ref:    (TB, D)        bf16   batch tile
    # w1_ref:   (D, TS*D)      bf16   current chunk of the first-layer weight
    # b1_ref:   (1, TS*D)      f32    current chunk of the first-layer bias
    # w2bd_ref: (TS*D, TS*D)   bf16   kron(I_TS, w2) -- bounded block-diagonal
    # b2_ref:   (1, TS*D)      f32    b2 tiled TS times along the lane axis
    # out_ref:  (TB, TS*D)     f32    lane-dense output chunk
    h = jnp.dot(x_ref[...], w1_ref[...], preferred_element_type=jnp.float32)
    h = h + b1_ref[...]
    if activation == "relu":
        h = jnp.maximum(h, 0.0)
    else:  # "gelu" (exact, matching torch.nn.GELU default)
        h = jax.nn.gelu(h, approximate=False)
    y = jnp.dot(h.astype(w2bd_ref.dtype), w2bd_ref[...],
                preferred_element_type=jnp.float32)
    out_ref[...] = (y + b2_ref[...]).astype(out_ref.dtype)


def _pick_ts(S, D):
    """Smallest divisor TS of S such that TS*D is a multiple of 128 (lane-dense).

    Falls back to TS == S (full extent along the S axis, always a legal block).
    TS == 1 whenever D is already a multiple of 128, i.e. zero wasted FLOPs.
    """
    for ts in range(1, S):
        if S % ts == 0 and (ts * D) % 128 == 0:
            return ts
    return S


def uplinear_forward(x, w1, b1, w2, b2, *, activation="relu", max_batch_tile=256):
    """UpLinear forward.

    x:  (B, D)
    w1: (D, S*D)   b1: (S*D,)   -- first Linear (weight transposed vs PyTorch)
    w2: (D, D)     b2: (D,)     -- second Linear
    returns (B, S, D) float32
    """
    assert activation in ("relu", "gelu")
    # TODO(synk): uplin_activation == 'none' (single Linear, no second layer) is
    # not implemented in this fused kernel.
    B, D = x.shape
    SD = w1.shape[1]
    S = SD // D
    assert S * D == SD

    TS = _pick_ts(S, D)            # sequence positions per grid step
    TSD = TS * D
    TB = B if B <= max_batch_tile else max_batch_tile
    nb = pl.cdiv(B, TB)
    ns = S // TS

    # bf16 MXU inputs (accumulation stays f32 inside the kernel).
    x_bf = x.astype(jnp.bfloat16)
    w1_bf = w1.astype(jnp.bfloat16)

    # Bounded block-diagonal second-layer weight for one TS-chunk:
    #   y[:, s*D:(s+1)*D] = act_h[:, s*D:(s+1)*D] @ w2  <=>  y_chunk = h_chunk @ kron(I_TS, w2)
    w2_bd = jnp.kron(jnp.eye(TS, dtype=w2.dtype), w2).astype(jnp.bfloat16)  # (TSD, TSD)

    b1_2d = b1.reshape(1, SD).astype(jnp.float32)
    b2_t = jnp.tile(b2.reshape(1, D), (1, TS)).astype(jnp.float32)          # (1, TSD)

    bytes_accessed = (
        x_bf.size * 2 * ns          # x re-fetched once per S-chunk
        + w1_bf.size * 2            # w1 streamed exactly once
        + w2_bd.size * 2 + b1_2d.size * 4 + b2_t.size * 4
        + B * SD * 4                # output
    )
    cost = pl.CostEstimate(
        flops=2 * B * D * SD + 2 * B * SD * TSD,
        transcendentals=0 if activation == "relu" else B * SD,
        bytes_accessed=bytes_accessed,
    )

    out = pl.pallas_call(
        functools.partial(_uplinear_kernel, activation=activation),
        out_shape=jax.ShapeDtypeStruct((B, SD), jnp.float32),
        grid_spec=pltpu.PrefetchScalarGridSpec(
            num_scalar_prefetch=0,
            # S-chunk axis outermost so each W1 chunk is DMA'd exactly once;
            # batch-tile axis innermost.
            grid=(ns, nb),
            in_specs=[
                pl.BlockSpec((TB, D), lambda j, i: (i, 0)),      # x: tiled over batch
                pl.BlockSpec((D, TSD), lambda j, i: (0, j)),     # w1: streamed over S-chunks
                pl.BlockSpec((1, TSD), lambda j, i: (0, j)),     # b1: streamed over S-chunks
                pl.BlockSpec((TSD, TSD), lambda j, i: (0, 0)),   # w2 block-diag: VMEM-resident
                pl.BlockSpec((1, TSD), lambda j, i: (0, 0)),     # b2 (tiled): VMEM-resident
            ],
            out_specs=pl.BlockSpec((TB, TSD), lambda j, i: (i, j)),  # lane-dense output chunk
        ),
        compiler_params=pltpu.CompilerParams(
            dimension_semantics=("parallel", "parallel"),  # independent tiles; v7x megacore
        ),
        cost_estimate=cost,
    )(x_bf, w1_bf, b1_2d, w2_bd, b2_t)

    # Unflatten (B, S*D) -> (B, S, D) outside the kernel (free at XLA level).
    return out.reshape(B, S, D)


def uplinear_reference(x, w1, b1, w2, b2, activation="relu"):
    B, D = x.shape
    SD = w1.shape[1]
    S = SD // D
    h = x @ w1 + b1
    if activation == "relu":
        h = jnp.maximum(h, 0.0)
    else:
        h = jax.nn.gelu(h, approximate=False)
    return h.reshape(B, S, D) @ w2 + b2


if __name__ == "__main__":
    # Small shapes consistent with the module: batch=2, d_input=32, uplin_seq_len=8.
    B, D, S = 2, 32, 8

    key = jax.random.PRNGKey(0)
    kx, k1, kb1, k2, kb2 = jax.random.split(key, 5)

    x = jax.random.normal(kx, (B, D), dtype=jnp.float32)
    # Parameters stored as (in_features, out_features) (transpose of nn.Linear.weight).
    w1 = jax.random.normal(k1, (D, S * D), dtype=jnp.float32) * (1.0 / jnp.sqrt(D))
    b1 = jax.random.normal(kb1, (S * D,), dtype=jnp.float32) * 0.01
    w2 = jax.random.normal(k2, (D, D), dtype=jnp.float32) * (1.0 / jnp.sqrt(D))
    b2 = jax.random.normal(kb2, (D,), dtype=jnp.float32) * 0.01

    ok = True
    for act in ("relu", "gelu"):
        y = uplinear_forward(x, w1, b1, w2, b2, activation=act)
        y = jax.block_until_ready(y)
        y_ref = uplinear_reference(x, w1, b1, w2, b2, activation=act)
        assert y.shape == (B, S, D), y.shape
        # Looser tolerance because the kernel feeds bf16 into the MXU (f32 accumulate),
        # while the reference is pure f32.
        ok = ok and bool(jnp.allclose(y, y_ref, atol=5e-2, rtol=5e-2))
    assert ok, "mismatch vs reference"

    print("KERNEL_OK")
</pallas_src>

<mosaic_0001>
module attributes {stable_mosaic.version = 11 : i64} {
  func.func @_uplinear_kernel(%arg0: i32, %arg1: i32, %arg2: memref<2x32xbf16, #tpu.memory_space<vmem>>, %arg3: memref<32x128xbf16, #tpu.memory_space<vmem>>, %arg4: memref<1x128xf32, #tpu.memory_space<vmem>>, %arg5: memref<128x128xbf16, #tpu.memory_space<vmem>>, %arg6: memref<1x128xf32, #tpu.memory_space<vmem>>, %arg7: memref<2x128xf32, #tpu.memory_space<vmem>>) attributes {dimension_semantics = [#tpu.dimension_semantics<parallel>, #tpu.dimension_semantics<parallel>], iteration_bounds = array<i64: 2, 1>, scalar_prefetch = 0 : i64, scratch_operands = 0 : i64, tpu.core_type = #tpu.core_type<tc>, window_params = [{transform_indices = @transform_0, window_bounds = array<i64: 2, 32>}, {transform_indices = @transform_1, window_bounds = array<i64: 32, 128>}, {transform_indices = @transform_2, window_bounds = array<i64: 1, 128>}, {pipeline_mode = #tpu.pipeline_mode<synchronous>, transform_indices = @transform_3, window_bounds = array<i64: 128, 128>}, {pipeline_mode = #tpu.pipeline_mode<synchronous>, transform_indices = @transform_4, window_bounds = array<i64: 1, 128>}, {transform_indices = @transform_5, window_bounds = array<i64: 2, 128>}]} {
    %c0 = arith.constant 0 : index
    %c0_0 = arith.constant 0 : index
    %0 = vector.load %arg2[%c0, %c0_0] : memref<2x32xbf16, #tpu.memory_space<vmem>>, vector<2x32xbf16>
    %c0_1 = arith.constant 0 : index
    %c0_2 = arith.constant 0 : index
    %1 = vector.load %arg3[%c0_1, %c0_2] : memref<32x128xbf16, #tpu.memory_space<vmem>>, vector<32x128xbf16>
    %cst = arith.constant dense<0.000000e+00> : vector<2x128xf32>
    %2 = tpu.matmul %0, %1, %cst {dimension_numbers = #tpu.dot_dimension_numbers<[1], [0], [0], [1], [0, 0, 1, 1], [], []>} : vector<2x32xbf16>, vector<32x128xbf16>, vector<2x128xf32> -> vector<2x128xf32>
    %c0_3 = arith.constant 0 : index
    %c0_4 = arith.constant 0 : index
    %3 = vector.load %arg4[%c0_3, %c0_4] : memref<1x128xf32, #tpu.memory_space<vmem>>, vector<1x128xf32>
    %4 = vector.broadcast %3 : vector<1x128xf32> to vector<2x128xf32>
    %5 = arith.addf %2, %4 : vector<2x128xf32>
    %cst_5 = arith.constant 0.000000e+00 : f32
    %6 = vector.broadcast %cst_5 : f32 to vector<2x128xf32>
    %7 = arith.maximumf %5, %6 : vector<2x128xf32>
    %8 = arith.truncf %7 : vector<2x128xf32> to vector<2x128xbf16>
    %c0_6 = arith.constant 0 : index
    %c0_7 = arith.constant 0 : index
    %9 = vector.load %arg5[%c0_6, %c0_7] : memref<128x128xbf16, #tpu.memory_space<vmem>>, vector<128x128xbf16>
    %cst_8 = arith.constant dense<0.000000e+00> : vector<2x128xf32>
    %10 = tpu.matmul %8, %9, %cst_8 {dimension_numbers = #tpu.dot_dimension_numbers<[1], [0], [0], [1], [0, 0, 1, 1], [], []>} : vector<2x128xbf16>, vector<128x128xbf16>, vector<2x128xf32> -> vector<2x128xf32>
    %c0_9 = arith.constant 0 : index
    %c0_10 = arith.constant 0 : index
    %11 = vector.load %arg6[%c0_9, %c0_10] : memref<1x128xf32, #tpu.memory_space<vmem>>, vector<1x128xf32>
    %12 = vector.broadcast %11 : vector<1x128xf32> to vector<2x128xf32>
    %13 = arith.addf %10, %12 : vector<2x128xf32>
    %c0_11 = arith.constant 0 : index
    %c0_12 = arith.constant 0 : index
    %14 = vector.load %arg7[%c0_11, %c0_12] : memref<2x128xf32, #tpu.memory_space<vmem>>, vector<2x128xf32>
    tpu.vector_store %arg7[%c0_11, %c0_12], %13 {strides = array<i32>} : memref<2x128xf32, #tpu.memory_space<vmem>>, vector<2x128xf32>,
    return
  }
  func.func @transform_0(%arg0: i32, %arg1: i32) -> (i32, i32) {
    %c0_i32 = arith.constant 0 : i32
    %c0_i32_0 = arith.constant 0 : i32
    return %arg1, %c0_i32 : i32, i32
  }
  func.func @transform_1(%arg0: i32, %arg1: i32) -> (i32, i32) {
    %c0_i32 = arith.constant 0 : i32
    %c0_i32_0 = arith.constant 0 : i32
    return %c0_i32, %arg0 : i32, i32
  }
  func.func @transform_2(%arg0: i32, %arg1: i32) -> (i32, i32) {
    %c0_i32 = arith.constant 0 : i32
    %c0_i32_0 = arith.constant 0 : i32
    return %c0_i32, %arg0 : i32, i32
  }
  func.func @transform_3(%arg0: i32, %arg1: i32) -> (i32, i32) {
    %c0_i32 = arith.constant 0 : i32
    %c0_i32_0 = arith.constant 0 : i32
    %c0_i32_1 = arith.constant 0 : i32
    return %c0_i32, %c0_i32_0 : i32, i32
  }
  func.func @transform_4(%arg0: i32, %arg1: i32) -> (i32, i32) {
    %c0_i32 = arith.constant 0 : i32
    %c0_i32_0 = arith.constant 0 : i32
    %c0_i32_1 = arith.constant 0 : i32
    return %c0_i32, %c0_i32_0 : i32, i32
  }
  func.func @transform_5(%arg0: i32, %arg1: i32) -> (i32, i32) {
    %c0_i32 = arith.constant 0 : i32
    return %arg1, %arg0 : i32, i32
  }
}

</mosaic_0001>

<llo_original>
// kernel: tpu_custom_call.1
$region0: #{tpu_custom_call.1}
  #allocation0 [shape = 'u32[]', space=smem, size = 0x4, offset = 0x4, fixed_abs, tag = 'smem constant byte address 0x4 - core index']
  #allocation1 [shape = 'u32[144,128]{1,0:T(1,128)}', space=vmem, size = 0x12000, scoped, tag = 'internal scratch']
  %s0 = inlined_call_operand.hbm [shape: bf16[2,32], index: 0, kind: input, shape index: {}]
  %s1 = inlined_call_operand.hbm [shape: bf16[32,256], index: 1, kind: input, shape index: {}]
  %s2 = inlined_call_operand.vmem [shape: f32[1,256], index: 2, kind: input, shape index: {}]
  %s3 = inlined_call_operand.hbm [shape: bf16[128,128], index: 3, kind: input, shape index: {}]
  %s4 = inlined_call_operand.vmem [shape: f32[1,128], index: 4, kind: input, shape index: {}]
  %s5 = inlined_call_operand.hbm [shape: f32[2,256], index: 5, kind: output, shape index: {}]
  %s6 = sld [smem:[#allocation0]]
  $region65: #{tpu_custom_call.1} parent=0
    _
  %s8 = ssub.s32 1, %s6
  %s9 = scalar_select 0, %s8, %s6
  $region1: #{tpu_custom_call.1} parent=0
    #allocation2 [shape = 'u8[512]{0}', space=vmem, size = 0x400, scoped, tag = 'input window, operand 0, single buffered']
    #allocation3 [shape = 's32[2]{0}', space=sflag, size = 0x8, scoped, tag = 'scoped memory for tpu_custom_call.1']
    #allocation4 [shape = 's32[2]{0}', space=sflag, size = 0x8, scoped, tag = 'scoped memory for tpu_custom_call.1']
    #allocation5 [shape = 'u8[16384]{0}', space=vmem, size = 0x4000, scoped, tag = 'input window, operand 1']
    #allocation6 [shape = 's32[2]{0}', space=sflag, size = 0x8, scoped, tag = 'scoped memory for tpu_custom_call.1']
    #allocation7 [shape = 'u8[32768]{0}', space=vmem, size = 0x8000, scoped, tag = 'input window, operand 3, single buffered']
    #allocation8 [shape = 'u8[2048]{0}', space=vmem, size = 0x800, scoped, tag = 'output window, operand 0']
    %10 = vsyncpa [#allocation3], 0
    %11 = vsyncpa [#allocation6], 0
    %s12 = scalar_lea.sflag [#allocation6], 1
    %13 = vsyncpa %s12, 0
    %14 = vsyncpa [#allocation4], 0
    %s15 = scalar_lea.sflag [#allocation4], 1
    %16 = vsyncpa %s15, 0
    loop: start=0, step=1, limit=4
    $region2: #{tpu_custom_call.1} parent=1 // loop_pre_header
      _
    $region3: #{tpu_custom_call.1} parent=1 // loop_header
      %s18 = sphi 0, %s22
      %p19 = scmp.ge.s32.totalorder %s18, 4
      %s25 = sphi 0, %s37
      %s26 = sphi 0, %s33
      %s27 = sphi 0, %s25
      %s28 = sphi 0, %s26
      %s29 = sphi 0, %s27
      %s30 = sphi 0, %s28
      %s40 = sphi 0, %s42
      %s43 = sphi 0, %s40
      %s44 = sphi 0, %s43
      %s60 = sphi 0, %s44
      %s66 = sphi 0, %s68
      %s69 = sphi 0, %s66
      %s70 = sphi 0, %s69
      %s86 = sphi 0, %s70
      %s92 = sphi 0, %s94
      %s95 = sphi 0, %s92
      %s96 = sphi 0, %s95
      %s112 = sphi 0, %s96
      %s116 = sphi 0, %s116
      %s118 = sphi 0, %s116
      %s119 = sphi 0, %s118
      %s133 = sphi 0, %s119
      %s137 = sphi 0, %s137
      %s139 = sphi 0, %s137
      %s140 = sphi 0, %s139
      %s154 = sphi 0, %s140
      %s162 = sphi 0, %s164
      %s165 = sphi 0, %s162
      %s166 = sphi 0, %s165
      %s182 = sphi 0, %s166
    $region4: #{tpu_custom_call.1} parent=1 // loop_header_branch
      %21 = sbr.rel (%p19) target = $region8
    $region5: #{tpu_custom_call.1} parent=1 // loop_body
      %s23 = ssub.s32 %s18, 1
      %s24 = ssub.s32 %s18, 2
      %s31 = sadd.s32 1, %s26
      %p32 = scmp.ge.s32.totalorder %s31, 1
      %s33 = scalar_select %p32, 0, %s31
      %s34 = sadd.s32 1, %s25
      %s35 = scalar_select %p32, %s34, %s25
      %p36 = scmp.ge.s32.totalorder %s35, 2
      %s37 = scalar_select %p36, 0, %s35
      %s38 = ssub.s32 %s26, %s33
      %p39 = scmp.eq.s32.totalorder %s38, 0
      %s41 = sadd.s32 %s40, 1
      %s42 = scalar_select %p39, %s40, %s41
      %p45 = pneg %p39
      %p46 = scmp.eq.s32.totalorder %s18, 1
      %p47 = por %p45, %p46
      %p48 = scmp.ne.s32.totalorder %s40, %s43
      %p49 = scmp.eq.s32.totalorder %s18, 0
      %p50 = por %p48, %p49
      %p51 = scmp.ne.s32.totalorder %s40, %s43
      %p52 = scmp.eq.s32.totalorder %s23, 1
      %p53 = por %p51, %p52
      %p54 = scmp.ne.s32.totalorder %s43, %s44
      %p55 = scmp.eq.s32.totalorder %s23, 0
      %p56 = por %p54, %p55
      %p57 = scmp.ne.s32.totalorder %s43, %s44
      %p58 = scmp.eq.s32.totalorder %s24, 1
      %p59 = por %p57, %p58
      %p61 = scmp.ne.s32.totalorder %s44, %s60
      %p62 = scmp.eq.s32.totalorder %s24, 0
      %p63 = por %p61, %p62
      %s64 = ssub.s32 %s25, %s37
      %p65 = scmp.eq.s32.totalorder %s64, 0
      %s67 = sadd.s32 %s66, 1
      %s68 = scalar_select %p65, %s66, %s67
      %p71 = pneg %p65
      %p72 = scmp.eq.s32.totalorder %s18, 1
      %p73 = por %p71, %p72
      %p74 = scmp.ne.s32.totalorder %s66, %s69
      %p75 = scmp.eq.s32.totalorder %s18, 0
      %p76 = por %p74, %p75
      %p77 = scmp.ne.s32.totalorder %s66, %s69
      %p78 = scmp.eq.s32.totalorder %s23, 1
      %p79 = por %p77, %p78
      %p80 = scmp.ne.s32.totalorder %s69, %s70
      %p81 = scmp.eq.s32.totalorder %s23, 0
      %p82 = por %p80, %p81
      %p83 = scmp.ne.s32.totalorder %s69, %s70
      %p84 = scmp.eq.s32.totalorder %s24, 1
      %p85 = por %p83, %p84
      %p87 = scmp.ne.s32.totalorder %s70, %s86
      %p88 = scmp.eq.s32.totalorder %s24, 0
      %p89 = por %p87, %p88
      %s90 = ssub.s32 %s25, %s37
      %p91 = scmp.eq.s32.totalorder %s90, 0
      %s93 = sadd.s32 %s92, 1
      %s94 = scalar_select %p91, %s92, %s93
      %p97 = pneg %p91
      %p98 = scmp.eq.s32.totalorder %s18, 1
      %p99 = por %p97, %p98
      %p100 = scmp.ne.s32.totalorder %s92, %s95
      %p101 = scmp.eq.s32.totalorder %s18, 0
      %p102 = por %p100, %p101
      %p103 = scmp.ne.s32.totalorder %s92, %s95
      %p104 = scmp.eq.s32.totalorder %s23, 1
      %p105 = por %p103, %p104
      %p106 = scmp.ne.s32.totalorder %s95, %s96
      %p107 = scmp.eq.s32.totalorder %s23, 0
      %p108 = por %p106, %p107
      %p109 = scmp.ne.s32.totalorder %s95, %s96
      %p110 = scmp.eq.s32.totalorder %s24, 1
      %p111 = por %p109, %p110
      %p113 = scmp.ne.s32.totalorder %s96, %s112
      %p114 = scmp.eq.s32.totalorder %s24, 0
      %p115 = por %p113, %p114
      %s117 = sadd.s32 %s116, 1
      %p120 = scmp.eq.s32.totalorder %s18, 1
      %p121 = scmp.ne.s32.totalorder %s116, %s118
      %p122 = scmp.eq.s32.totalorder %s18, 0
      %p123 = por %p121, %p122
      %p124 = scmp.ne.s32.totalorder %s116, %s118
      %p125 = scmp.eq.s32.totalorder %s23, 1
      %p126 = por %p124, %p125
      %p127 = scmp.ne.s32.totalorder %s118, %s119
      %p128 = scmp.eq.s32.totalorder %s23, 0
      %p129 = por %p127, %p128
      %p130 = scmp.ne.s32.totalorder %s118, %s119
      %p131 = scmp.eq.s32.totalorder %s24, 1
      %p132 = por %p130, %p131
      %p134 = scmp.ne.s32.totalorder %s119, %s133
      %p135 = scmp.eq.s32.totalorder %s24, 0
      %p136 = por %p134, %p135
      %s138 = sadd.s32 %s137, 1
      %p141 = scmp.eq.s32.totalorder %s18, 1
      %p142 = scmp.ne.s32.totalorder %s137, %s139
      %p143 = scmp.eq.s32.totalorder %s18, 0
      %p144 = por %p142, %p143
      %p145 = scmp.ne.s32.totalorder %s137, %s139
      %p146 = scmp.eq.s32.totalorder %s23, 1
      %p147 = por %p145, %p146
      %p148 = scmp.ne.s32.totalorder %s139, %s140
      %p149 = scmp.eq.s32.totalorder %s23, 0
      %p150 = por %p148, %p149
      %p151 = scmp.ne.s32.totalorder %s139, %s140
      %p152 = scmp.eq.s32.totalorder %s24, 1
      %p153 = por %p151, %p152
      %p155 = scmp.ne.s32.totalorder %s140, %s154
      %p156 = scmp.eq.s32.totalorder %s24, 0
      %p157 = por %p155, %p156
      %s158 = ssub.s32 %s26, %s33
      %s159 = ssub.s32 %s25, %s37
      %s160 = sor.u32 %s158, %s159
      %p161 = scmp.eq.s32.totalorder %s160, 0
      %s163 = sadd.s32 %s162, 1
      %s164 = scalar_select %p161, %s162, %s163
      %p167 = pneg %p161
      %p168 = scmp.eq.s32.totalorder %s18, 1
      %p169 = por %p167, %p168
      %p170 = scmp.ne.s32.totalorder %s162, %s165
      %p171 = scmp.eq.s32.totalorder %s18, 0
      %p172 = por %p170, %p171
      %p173 = scmp.ne.s32.totalorder %s162, %s165
      %p174 = scmp.eq.s32.totalorder %s23, 1
      %p175 = por %p173, %p174
      %p176 = scmp.ne.s32.totalorder %s165, %s166
      %p177 = scmp.eq.s32.totalorder %s23, 0
      %p178 = por %p176, %p177
      %p179 = scmp.ne.s32.totalorder %s165, %s166
      %p180 = scmp.eq.s32.totalorder %s24, 1
      %p181 = por %p179, %p180
      %p183 = scmp.ne.s32.totalorder %s166, %s182
      %p184 = scmp.eq.s32.totalorder %s24, 0
      %p185 = por %p183, %p184
      %p186 = scmp.le.s32.totalorder 1, %s18
      %p187 = scmp.lt.s32.totalorder %s18, 3
      %p188 = pnand %p186, %p187
      %p189 = pneg %p188
      // Predicated region
      $region9: #{tpu_custom_call.1} parent=5 // pred_check
        _
      $region10: #{tpu_custom_call.1} parent=5 // pred_check_branch
        %191 = sbr.rel (%p188) target = $region12
      $region11: #{tpu_custom_call.1} parent=5 // pred_region
        %s192 = ssub.s32 %s18, 1
        // Predicated region
        $region13: #{tpu_custom_call.1} parent=11 // pred_check
          %p193 = pneg %p56
        $region14: #{tpu_custom_call.1} parent=11 // pred_check_branch
          %195 = sbr.rel (%p193) target = $region16
        $region15: #{tpu_custom_call.1} parent=11 // pred_region
          %s197 = ssub.s32 16, 16
          %198 = vsyncadd [#allocation3], %s197
          %s199 = smul.addr %s28, 16
          %s200 = scalar_lea.hbm %s0, %s199
          %s202 = sshll.u32 [#allocation2], 4
          %s203 = int_to_ptr.vmem [resolvable:$true] %s202
          %205 = dma.hbm_to_vmem [thread:$0]  %s200, 16, %s203, [#allocation3]
        $region16: #{tpu_custom_call.1} parent=11 // pred_fallthru
          _
        // Predicated region
        $region17: #{tpu_custom_call.1} parent=11 // pred_check
          %p206 = pneg %p129
        $region18: #{tpu_custom_call.1} parent=11 // pred_check_branch
          %208 = sbr.rel (%p206) target = $region20
        $region19: #{tpu_custom_call.1} parent=11 // pred_region
          %s210 = ssub.s32 1024, 1024
          %211 = vsyncadd [#allocation6], %s210
          %s212 = sshll.u32 [#allocation7], 4
          %s213 = int_to_ptr.vmem [resolvable:$true] %s212
          %218 = dma.hbm_to_vmem [thread:$0]  %s3, 1024, %s213, [#allocation6], 64, 64, 4
        $region20: #{tpu_custom_call.1} parent=11 // pred_fallthru
          _
        // Predicated region
        $region21: #{tpu_custom_call.1} parent=11 // pred_check
          %p219 = pneg %p150
        $region22: #{tpu_custom_call.1} parent=11 // pred_check_branch
          %221 = sbr.rel (%p219) target = $region24
        $region23: #{tpu_custom_call.1} parent=11 // pred_region
          _
        $region24: #{tpu_custom_call.1} parent=11 // pred_fallthru
          _
      $region12: #{tpu_custom_call.1} parent=5 // pred_fallthru
        _
      %p222 = scmp.lt.s32.totalorder %s18, 2
      // Predicated region
      $region25: #{tpu_custom_call.1} parent=5 // pred_check
        %p223 = pneg %p222
      $region26: #{tpu_custom_call.1} parent=5 // pred_check_branch
        %225 = sbr.rel (%p223) target = $region28
      $region27: #{tpu_custom_call.1} parent=5 // pred_region
        // Predicated region
        $region29: #{tpu_custom_call.1} parent=27 // pred_check
          %p226 = pneg %p76
        $region30: #{tpu_custom_call.1} parent=27 // pred_check_branch
          %228 = sbr.rel (%p226) target = $region32
        $region31: #{tpu_custom_call.1} parent=27 // pred_region
          %s229 = sand.u32 %s18, 1
          %s230 = scalar_lea.sflag [#allocation6], %s229
          %s231 = sand.u32 %s66, 1
          %s232 = smul.addr %s231, 16
          %s233 = scalar_lea.vmem [#allocation5], %s232
          %s235 = ssub.s32 256, 256
          %236 = vsyncadd %s230, %s235
          %s237 = smul.addr %s25, 64
          %s238 = scalar_lea.hbm %s1, %s237
          %s239 = sshll.u32 %s233, 4
          %s240 = int_to_ptr.vmem [resolvable:$true] %s239
          %245 = dma.hbm_to_vmem [thread:$0]  %s238, 256, %s240, %s230, 128, 64, 4
        $region32: #{tpu_custom_call.1} parent=27 // pred_fallthru
          _
        // Predicated region
        $region33: #{tpu_custom_call.1} parent=27 // pred_check
          %p246 = pneg %p102
        $region34: #{tpu_custom_call.1} parent=27 // pred_check_branch
          %248 = sbr.rel (%p246) target = $region36
        $region35: #{tpu_custom_call.1} parent=27 // pred_region
          %p249 = scmp.lt.s32.totalorder %s25, 1
          %s250 = scalar_select %p249, %s25, 1
          %s251 = scalar_lea.vmem %s2, %s250
        $region36: #{tpu_custom_call.1} parent=27 // pred_fallthru
          _
      $region28: #{tpu_custom_call.1} parent=5 // pred_fallthru
        _
      %p252 = scmp.le.s32.totalorder 1, %s18
      %p253 = scmp.lt.s32.totalorder %s18, 3
      %p254 = pnand %p252, %p253
      %p255 = pneg %p254
      // Predicated region
      $region37: #{tpu_custom_call.1} parent=5 // pred_check
        _
      $region38: #{tpu_custom_call.1} parent=5 // pred_check_branch
        %257 = sbr.rel (%p254) target = $region40
      $region39: #{tpu_custom_call.1} parent=5 // pred_region
        %s258 = ssub.s32 %s18, 1
        // Predicated region
        $region41: #{tpu_custom_call.1} parent=39 // pred_check
          %p259 = pneg %p56
        $region42: #{tpu_custom_call.1} parent=39 // pred_check_branch
          %261 = sbr.rel (%p259) target = $region44
        $region43: #{tpu_custom_call.1} parent=39 // pred_region
          %262 = dma.done [#allocation3], 16
        $region44: #{tpu_custom_call.1} parent=39 // pred_fallthru
          _
        %s263 = sand.u32 %s23, 1
        %s264 = scalar_lea.sflag [#allocation6], %s263
        %s265 = sand.u32 %s69, 1
        %s266 = smul.addr %s265, 16
        %s267 = scalar_lea.vmem [#allocation5], %s266
        // Predicated region
        $region45: #{tpu_custom_call.1} parent=39 // pred_check
          %p268 = pneg %p82
        $region46: #{tpu_custom_call.1} parent=39 // pred_check_branch
          %270 = sbr.rel (%p268) target = $region48
        $region47: #{tpu_custom_call.1} parent=39 // pred_region
          %271 = dma.done %s264, 256
        $region48: #{tpu_custom_call.1} parent=39 // pred_fallthru
          _
        // Predicated region
        $region49: #{tpu_custom_call.1} parent=39 // pred_check
          %p272 = pneg %p129
        $region50: #{tpu_custom_call.1} parent=39 // pred_check_branch
          %274 = sbr.rel (%p272) target = $region52
        $region51: #{tpu_custom_call.1} parent=39 // pred_region
          %275 = dma.done [#allocation6], 1024
        $region52: #{tpu_custom_call.1} parent=39 // pred_fallthru
          _
        %p276 = pneg %p56
        %p277 = pneg %p53
        %s278 = sand.u32 %s23, 1
        %s279 = scalar_lea.sflag [#allocation6], %s278
        %s280 = sand.u32 %s69, 1
        %s281 = smul.addr %s280, 16
        %s282 = scalar_lea.vmem [#allocation5], %s281
        %p283 = pneg %p82
        %p284 = pneg %p79
        %p285 = scmp.lt.s32.totalorder %s27, 1
        %s286 = scalar_select %p285, %s27, 1
        %s287 = scalar_lea.vmem %s2, %s286
        %p288 = pneg %p108
        %p289 = pneg %p105
        %p290 = pneg %p129
        %p291 = pneg %p126
        %p292 = pneg %p150
        %p293 = pneg %p147
        %p294 = pneg %p178
        %p295 = pneg %p175
        %s296 = sand.u32 %s165, 1
        %s297 = scalar_lea.sflag [#allocation4], %s296
        %s298 = sand.u32 %s165, 1
        %s299 = smul.addr %s298, 2
        %s300 = scalar_lea.vmem [#allocation8], %s299
        %p301 = scmp.lt.s32.totalorder %s27, 1
        %s302 = scalar_select %p301, %s27, 1
        %s303 = scalar_lea.vmem %s2, %s302
        %v305 = vld [vmem:[#allocation2] sm:$0x1]
        %v306 = vld [vmem:[%s267] sm:$0xf]
        %v307 = vld [vmem:[%s267 + $0x4] sm:$0xf]
        %v308 = vld [vmem:[%s267 + $0x8] sm:$0xf]
        %v309 = vld [vmem:[%s267 + $0xc] sm:$0xf]
        %v310 = vld [vmem:[%s303] sm:$0x1]
        %v312 = vlaneseq
        %v313 = vshrl.u32 %v312, 7
        %v314 = vsub.s32 0, %v313
        %v315 = vrot.slane %v310, %v314
        %v321 = vunpack.c.l.b16 %v306
        %v322 = vunpack.c.l.b16 %v307
        %v323 = vunpack.c.l.b16 %v308
        %v324 = vunpack.c.l.b16 %v309
        %v325 = vpack.c.b16 %v322, %v321
        %v326 = vpack.c.b16 %v324, %v323
        %vm329 = vcmask 261120
        %v331 = vsel %vm329, %v305, 0
        %333 = vmatprep.subr.bf16.mxu0 0
        %334 = vmatpush1.bf16.msra.mxu0 %v325
        %335 = vmatprep.subr.bf16.mxu0 0
        %336 = vmatpush1.bf16.msra.mxu0 %v326
        %337 = vmatprep.subr.bf16.mxu0 0
        %338 = vmatpush1.bf16.msra.mxu0 0
        %339 = vmatprep.subr.bf16.mxu0 0
        %340 = vmatpush1.bf16.msra.mxu0 0
        %341 = vmatprep.subr.bf16.mxu0 0
        %342 = vmatpush1.bf16.msra.mxu0 0
        %343 = vmatprep.subr.bf16.mxu0 0
        %344 = vmatpush1.bf16.msra.mxu0 0
        %345 = vmatprep.subr.bf16.mxu0 0
        %346 = vmatpush1.bf16.msra.mxu0 0
        %347 = vmatprep.subr.bf16.mxu0 0
        %348 = vmatpush1.bf16.msra.mxu0 0
        %349 = vmatprep.subr.bf16.mxu0 0
        %350 = vmatpush1.bf16.msra.mxu0 0
        %351 = vmatprep.subr.bf16.mxu0 0
        %352 = vmatpush1.bf16.msra.mxu0 0
        %353 = vmatprep.subr.bf16.mxu0 0
        %354 = vmatpush1.bf16.msra.mxu0 0
        %355 = vmatprep.subr.bf16.mxu0 0
        %356 = vmatpush1.bf16.msra.mxu0 0
        %357 = vmatprep.subr.bf16.mxu0 0
        %358 = vmatpush1.bf16.msra.mxu0 0
        %359 = vmatprep.subr.bf16.mxu0 0
        %360 = vmatpush1.bf16.msra.mxu0 0
        %361 = vmatprep.subr.bf16.mxu0 0
        %362 = vmatpush1.bf16.msra.mxu0 0
        %363 = vmatprep.subr.bf16.mxu0 0
        %364 = vmatpush1.bf16.msra.mxu0 0
        %365 = vmatprep.mubr.bf16.mxu0 0
        %366 = vmatmul.mubr.bf16.gmra.mrb[0].mxu0 %v331
        %v367 = vpop.f32.mrb[0].mxu0
        %v368 = vadd.f32 %v315, %v367
        %v369 = vpop.f32.mrb[0].mxu0
        %v370 = vpop.f32.mrb[0].mxu0
        %v371 = vpop.f32.mrb[0].mxu0
        %372 = vdwg.mxu0
        %v373 = vmax.f32 %v368, 0.0
        %v374 = vpack.c.bf16 %v373, %v373
        %v375 = vld [vmem:[#allocation7] sm:$0xf]
        %v376 = vld [vmem:[#allocation7 + $0x4] sm:$0xf]
        %v377 = vld [vmem:[#allocation7 + $0x8] sm:$0xf]
        %v378 = vld [vmem:[#allocation7 + $0xc] sm:$0xf]
        %v379 = vld [vmem:[#allocation7 + $0x10] sm:$0xf]
        %v380 = vld [vmem:[#allocation7 + $0x14] sm:$0xf]
        %v381 = vld [vmem:[#allocation7 + $0x18] sm:$0xf]
        %v382 = vld [vmem:[#allocation7 + $0x1c] sm:$0xf]
        %v383 = vld [vmem:[#allocation7 + $0x20] sm:$0xf]
        %v384 = vld [vmem:[#allocation7 + $0x24] sm:$0xf]
        %v385 = vld [vmem:[#allocation7 + $0x28] sm:$0xf]
        %v386 = vld [vmem:[#allocation7 + $0x2c] sm:$0xf]
        %v387 = vld [vmem:[#allocation7 + $0x30] sm:$0xf]
        %v388 = vld [vmem:[#allocation7 + $0x34] sm:$0xf]
        %v389 = vld [vmem:[#allocation7 + $0x38] sm:$0xf]
        %v390 = vld [vmem:[#allocation7 + $0x3c] sm:$0xf]
        %v391 = vld [vmem:[%s4] sm:$0x1]
        %v393 = vlaneseq
        %v394 = vshrl.u32 %v393, 7
        %v395 = vsub.s32 0, %v394
        %v396 = vrot.slane %v391, %v395
        %v414 = vunpack.c.l.b16 %v375
        %v415 = vunpack.c.l.b16 %v376
        %v416 = vunpack.c.l.b16 %v377
        %v417 = vunpack.c.l.b16 %v378
        %v418 = vunpack.c.l.b16 %v379
        %v419 = vunpack.c.l.b16 %v380
        %v420 = vunpack.c.l.b16 %v381
        %v421 = vunpack.c.l.b16 %v382
        %v422 = vunpack.c.l.b16 %v383
        %v423 = vunpack.c.l.b16 %v384
        %v424 = vunpack.c.l.b16 %v385
        %v425 = vunpack.c.l.b16 %v386
        %v426 = vunpack.c.l.b16 %v387
        %v427 = vunpack.c.l.b16 %v388
        %v428 = vunpack.c.l.b16 %v389
        %v429 = vunpack.c.l.b16 %v390
        %v430 = vpack.c.b16 %v415, %v414
        %v431 = vpack.c.b16 %v417, %v416
        %v432 = vpack.c.b16 %v419, %v418
        %v433 = vpack.c.b16 %v421, %v420
        %v434 = vpack.c.b16 %v423, %v422
        %v435 = vpack.c.b16 %v425, %v424
        %v436 = vpack.c.b16 %v427, %v426
        %v437 = vpack.c.b16 %v429, %v428
        %446 = vmatprep.subr.bf16.mxu0 0
        %447 = vmatpush1.bf16.msra.mxu0 %v430
        %448 = vmatprep.subr.bf16.mxu0 0
        %449 = vmatpush1.bf16.msra.mxu0 %v431
        %450 = vmatprep.subr.bf16.mxu0 0
        %451 = vmatpush1.bf16.msra.mxu0 %v432
        %452 = vmatprep.subr.bf16.mxu0 0
        %453 = vmatpush1.bf16.msra.mxu0 %v433
        %454 = vmatprep.subr.bf16.mxu0 0
        %455 = vmatpush1.bf16.msra.mxu0 %v434
        %456 = vmatprep.subr.bf16.mxu0 0
        %457 = vmatpush1.bf16.msra.mxu0 %v435
        %458 = vmatprep.subr.bf16.mxu0 0
        %459 = vmatpush1.bf16.msra.mxu0 %v436
        %460 = vmatprep.subr.bf16.mxu0 0
        %461 = vmatpush1.bf16.msra.mxu0 %v437
        %462 = vmatprep.subr.bf16.mxu0 0
        %463 = vmatpush1.bf16.msra.mxu0 0
        %464 = vmatprep.subr.bf16.mxu0 0
        %465 = vmatpush1.bf16.msra.mxu0 0
        %466 = vmatprep.subr.bf16.mxu0 0
        %467 = vmatpush1.bf16.msra.mxu0 0
        %468 = vmatprep.subr.bf16.mxu0 0
        %469 = vmatpush1.bf16.msra.mxu0 0
        %470 = vmatprep.subr.bf16.mxu0 0
        %471 = vmatpush1.bf16.msra.mxu0 0
        %472 = vmatprep.subr.bf16.mxu0 0
        %473 = vmatpush1.bf16.msra.mxu0 0
        %474 = vmatprep.subr.bf16.mxu0 0
        %475 = vmatpush1.bf16.msra.mxu0 0
        %476 = vmatprep.subr.bf16.mxu0 0
        %477 = vmatpush1.bf16.msra.mxu0 0
        %478 = vmatprep.mubr.bf16.mxu0 0
        %479 = vmatmul.mubr.bf16.gmra.mrb[0].mxu0 %v374
        %v480 = vpop.f32.mrb[0].mxu0
        %v481 = vadd.f32 %v396, %v480
        %v482 = vpop.f32.mrb[0].mxu0
        %v483 = vpop.f32.mrb[0].mxu0
        %v484 = vpop.f32.mrb[0].mxu0
        %485 = vdwg.mxu0
        %486 = vst [vmem:[%s300] sm:$0x3] %v481
        %s487 = sand.u32 %s165, 1
        %s488 = scalar_lea.sflag [#allocation4], %s487
        %s489 = sand.u32 %s165, 1
        %s490 = smul.addr %s489, 2
        %s491 = scalar_lea.vmem [#allocation8], %s490
        // Predicated region
        $region53: #{tpu_custom_call.1} parent=39 // pred_check
          %p492 = pneg %p175
        $region54: #{tpu_custom_call.1} parent=39 // pred_check_branch
          %494 = sbr.rel (%p492) target = $region56
        $region55: #{tpu_custom_call.1} parent=39 // pred_region
          %s496 = ssub.s32 32, 32
          %497 = vsyncadd %s488, %s496
          %s498 = smul.addr %s28, 2
          %s499 = sadd.s32 %s27, %s498
          %s500 = smul.addr %s499, 32
          %s501 = scalar_lea.hbm %s5, %s500
          %s503 = sshll.u32 %s491, 4
          %s504 = int_to_ptr.vmem [resolvable:$true] %s503
          %506 = dma.vmem_to_hbm [thread:$0]  %s504, 32, %s501, %s488
        $region56: #{tpu_custom_call.1} parent=39 // pred_fallthru
          _
      $region40: #{tpu_custom_call.1} parent=5 // pred_fallthru
        _
      %p507 = scmp.le.s32.totalorder 2, %s18
      // Predicated region
      $region57: #{tpu_custom_call.1} parent=5 // pred_check
        %p508 = pneg %p507
      $region58: #{tpu_custom_call.1} parent=5 // pred_check_branch
        %510 = sbr.rel (%p508) target = $region60
      $region59: #{tpu_custom_call.1} parent=5 // pred_region
        %s511 = ssub.s32 %s18, 2
        // Predicated region
        $region61: #{tpu_custom_call.1} parent=59 // pred_check
          %p512 = pneg %p181
        $region62: #{tpu_custom_call.1} parent=59 // pred_check_branch
          %514 = sbr.rel (%p512) target = $region64
        $region63: #{tpu_custom_call.1} parent=59 // pred_region
          %s515 = sand.u32 %s166, 1
          %s516 = scalar_lea.sflag [#allocation4], %s515
          %s517 = sand.u32 %s166, 1
          %s518 = smul.addr %s517, 2
          %s519 = scalar_lea.vmem [#allocation8], %s518
          %520 = dma.done %s516, 32
        $region64: #{tpu_custom_call.1} parent=59 // pred_fallthru
          _
      $region60: #{tpu_custom_call.1} parent=5 // pred_fallthru
        _
    $region6: #{tpu_custom_call.1} parent=1 // loop_footer
      %s22 = sadd.s32 1, %s18
    $region7: #{tpu_custom_call.1} parent=1 // loop_footer_branch
      %17 = sbr.rel target = $region3
    $region8: #{tpu_custom_call.1} parent=1 // loop_exit
      _
    %521 = vsyncpa [#allocation3], 1
    %s522 = scalar_lea.sflag [#allocation3], 1
    %523 = vsyncpa %s522, 1
    %524 = vsyncpa [#allocation6], 1
    %s525 = scalar_lea.sflag [#allocation6], 1
    %526 = vsyncpa %s525, 1
    %527 = vsyncpa [#allocation4], 1
    %s528 = scalar_lea.sflag [#allocation4], 1
    %529 = vsyncpa %s528, 1

</llo_original>
